<compile_context>
chip_gen: v7x
topology: tpu7x:2x2x1
jax: 0.10.0
libtpu: 0.0.40
codegen_flags: <defaults>
</compile_context>

<pallas_src>
import jax
import jax.numpy as jnp
from jax.experimental import pallas as pl
from jax.experimental.pallas import tpu as pltpu


def actor_kernel(x_ref, w1_ref, w2_ref, w3_ref, b_ref, o_ref):
    h1_dim = w1_ref.shape[1]   # 128
    h2_dim = w2_ref.shape[1]   # 64
    a_dim = w3_ref.shape[1]    # action_size

    # Static slices of the packed bias block (f32): row 0 -> b1, row 1 -> b2, row 2 -> b3.
    b1 = b_ref[0:1, 0:h1_dim]
    b2 = b_ref[1:2, 0:h2_dim]
    b3 = b_ref[2:3, 0:a_dim]

    x = x_ref[...].astype(jnp.bfloat16)
    h1 = jnp.dot(x, w1_ref[...], preferred_element_type=jnp.float32) + b1
    h1 = jnp.maximum(h1, 0.0)                                            # F.relu
    h2 = jnp.dot(h1.astype(jnp.bfloat16), w2_ref[...],
                 preferred_element_type=jnp.float32) + b2
    h2 = jnp.maximum(h2, 0.0)                                            # F.relu
    z3 = jnp.dot(h2.astype(jnp.bfloat16), w3_ref[...],
                 preferred_element_type=jnp.float32) + b3
    o_ref[...] = jnp.tanh(z3).astype(o_ref.dtype)                        # torch.tanh


def actor_forward(state, params):
    """state: (B, state_size) f32. Returns (B, action_size) f32."""
    w1, w2, w3, b_packed = params
    B, S = state.shape
    H1 = w1.shape[1]
    H2 = w2.shape[1]
    A = w3.shape[1]

    # Batch tile: full batch if small, otherwise 256 rows (multiple of 8 sublanes; tiny in VMEM).
    TB = B if B <= 256 else 256
    grid = (pl.cdiv(B, TB),)

    def resident(shape):
        # Weights / packed biases: same block index every step -> stay resident in VMEM.
        return pl.BlockSpec(shape, lambda i: tuple(0 for _ in shape))

    itemsize = lambda a: a.size * a.dtype.itemsize
    cost = pl.CostEstimate(
        flops=2 * B * (S * H1 + H1 * H2 + H2 * A),
        transcendentals=B * A,                      # tanh
        bytes_accessed=(itemsize(state) + itemsize(w1) + itemsize(w2)
                        + itemsize(w3) + itemsize(b_packed) + B * A * 4),
    )

    return pl.pallas_call(
        actor_kernel,
        out_shape=jax.ShapeDtypeStruct((B, A), jnp.float32),
        grid=grid,
        in_specs=[
            pl.BlockSpec((TB, S), lambda i: (i, 0)),
            resident(w1.shape),
            resident(w2.shape),
            resident(w3.shape),
            resident(b_packed.shape),
        ],
        out_specs=pl.BlockSpec((TB, A), lambda i: (i, 0)),
        compiler_params=pltpu.CompilerParams(
            dimension_semantics=("parallel",),
        ),
        cost_estimate=cost,
    )(state, w1, w2, w3, b_packed)


def init_actor_params(key, state_size, action_size):
    """Match Actor.reset_parameters(): weights ~ N(0, 0.1)/N(0, 0.01); biases keep the
    default nn.Linear init U(-1/sqrt(fan_in), +1/sqrt(fan_in)). Weights are stored
    transposed (in, out) and in bf16 for the MXU; biases stay f32, packed into (3, 128)."""
    ks = jax.random.split(key, 6)
    w1 = (0.1 * jax.random.normal(ks[0], (state_size, 128), jnp.float32)).astype(jnp.bfloat16)
    w2 = (0.1 * jax.random.normal(ks[1], (128, 64), jnp.float32)).astype(jnp.bfloat16)
    w3 = (0.01 * jax.random.normal(ks[2], (64, action_size), jnp.float32)).astype(jnp.bfloat16)

    def uinit(k, n, fan_in):
        bound = 1.0 / jnp.sqrt(jnp.float32(fan_in))
        return jax.random.uniform(k, (n,), jnp.float32, minval=-bound, maxval=bound)

    b1 = uinit(ks[3], 128, state_size)
    b2 = uinit(ks[4], 64, 128)
    b3 = uinit(ks[5], action_size, 64)

    pad = lambda b: jnp.pad(b, (0, 128 - b.shape[0]))
    b_packed = jnp.stack([pad(b1), pad(b2), pad(b3)], axis=0).astype(jnp.float32)
    return (w1, w2, w3, b_packed)


def actor_reference(state, params):
    """Pure-JAX reference with the same bf16-input / f32-accumulate matmul semantics."""
    w1, w2, w3, b_packed = params
    b1 = b_packed[0, : w1.shape[1]]
    b2 = b_packed[1, : w2.shape[1]]
    b3 = b_packed[2, : w3.shape[1]]
    h1 = jnp.maximum(
        jnp.dot(state.astype(jnp.bfloat16), w1, preferred_element_type=jnp.float32) + b1, 0.0)
    h2 = jnp.maximum(
        jnp.dot(h1.astype(jnp.bfloat16), w2, preferred_element_type=jnp.float32) + b2, 0.0)
    z3 = jnp.dot(h2.astype(jnp.bfloat16), w3, preferred_element_type=jnp.float32) + b3
    return jnp.tanh(z3)


if __name__ == "__main__":
    key = jax.random.PRNGKey(0)
    k_p, k_s = jax.random.split(key, 2)

    batch = 8
    state_size = 16
    action_size = 8

    params = init_actor_params(k_p, state_size, action_size)
    state = jax.random.normal(k_s, (batch, state_size), jnp.float32)

    out = jax.block_until_ready(actor_forward(state, params))
    ref = jax.block_until_ready(actor_reference(state, params))

    assert out.shape == (batch, action_size), out.shape
    assert bool(jnp.all(jnp.abs(out) <= 1.0)), "tanh output out of range"
    assert jnp.allclose(out, ref, atol=2e-3, rtol=2e-3), "mismatch vs reference"

    print("KERNEL_OK")
</pallas_src>

<mosaic_0001>
module attributes {stable_mosaic.version = 11 : i64} {
  func.func @actor_kernel(%arg0: i32, %arg1: memref<8x16xf32, #tpu.memory_space<vmem>>, %arg2: memref<16x128xbf16, #tpu.memory_space<vmem>>, %arg3: memref<128x64xbf16, #tpu.memory_space<vmem>>, %arg4: memref<64x8xbf16, #tpu.memory_space<vmem>>, %arg5: memref<3x128xf32, #tpu.memory_space<vmem>>, %arg6: memref<8x8xf32, #tpu.memory_space<vmem>>) attributes {dimension_semantics = [#tpu.dimension_semantics<parallel>], iteration_bounds = array<i64: 1>, scalar_prefetch = 0 : i64, scratch_operands = 0 : i64, tpu.core_type = #tpu.core_type<tc>, window_params = [{transform_indices = @transform_0, window_bounds = array<i64: 8, 16>}, {pipeline_mode = #tpu.pipeline_mode<synchronous>, transform_indices = @transform_1, window_bounds = array<i64: 16, 128>}, {pipeline_mode = #tpu.pipeline_mode<synchronous>, transform_indices = @transform_2, window_bounds = array<i64: 128, 64>}, {pipeline_mode = #tpu.pipeline_mode<synchronous>, transform_indices = @transform_3, window_bounds = array<i64: 64, 8>}, {pipeline_mode = #tpu.pipeline_mode<synchronous>, transform_indices = @transform_4, window_bounds = array<i64: 3, 128>}, {transform_indices = @transform_5, window_bounds = array<i64: 8, 8>}]} {
    %c0 = arith.constant 0 : index
    %c0_0 = arith.constant 0 : index
    %0 = vector.load %arg5[%c0, %c0_0] : memref<3x128xf32, #tpu.memory_space<vmem>>, vector<1x128xf32>
    %c1 = arith.constant 1 : index
    %c0_1 = arith.constant 0 : index
    %1 = vector.load %arg5[%c1, %c0_1] : memref<3x128xf32, #tpu.memory_space<vmem>>, vector<1x64xf32>
    %c2 = arith.constant 2 : index
    %c0_2 = arith.constant 0 : index
    %2 = vector.load %arg5[%c2, %c0_2] : memref<3x128xf32, #tpu.memory_space<vmem>>, vector<1x8xf32>
    %c0_3 = arith.constant 0 : index
    %c0_4 = arith.constant 0 : index
    %3 = vector.load %arg1[%c0_3, %c0_4] : memref<8x16xf32, #tpu.memory_space<vmem>>, vector<8x16xf32>
    %4 = arith.truncf %3 : vector<8x16xf32> to vector<8x16xbf16>
    %c0_5 = arith.constant 0 : index
    %c0_6 = arith.constant 0 : index
    %5 = vector.load %arg2[%c0_5, %c0_6] : memref<16x128xbf16, #tpu.memory_space<vmem>>, vector<16x128xbf16>
    %cst = arith.constant dense<0.000000e+00> : vector<8x128xf32>
    %6 = tpu.matmul %4, %5, %cst {dimension_numbers = #tpu.dot_dimension_numbers<[1], [0], [0], [1], [0, 0, 1, 1], [], []>} : vector<8x16xbf16>, vector<16x128xbf16>, vector<8x128xf32> -> vector<8x128xf32>
    %7 = vector.broadcast %0 : vector<1x128xf32> to vector<8x128xf32>
    %8 = arith.addf %6, %7 : vector<8x128xf32>
    %cst_7 = arith.constant 0.000000e+00 : f32
    %9 = vector.broadcast %cst_7 : f32 to vector<8x128xf32>
    %10 = arith.maximumf %8, %9 : vector<8x128xf32>
    %11 = arith.truncf %10 : vector<8x128xf32> to vector<8x128xbf16>
    %c0_8 = arith.constant 0 : index
    %c0_9 = arith.constant 0 : index
    %12 = vector.load %arg3[%c0_8, %c0_9] : memref<128x64xbf16, #tpu.memory_space<vmem>>, vector<128x64xbf16>
    %cst_10 = arith.constant dense<0.000000e+00> : vector<8x64xf32>
    %13 = tpu.matmul %11, %12, %cst_10 {dimension_numbers = #tpu.dot_dimension_numbers<[1], [0], [0], [1], [0, 0, 1, 1], [], []>} : vector<8x128xbf16>, vector<128x64xbf16>, vector<8x64xf32> -> vector<8x64xf32>
    %14 = vector.broadcast %1 : vector<1x64xf32> to vector<8x64xf32>
    %15 = arith.addf %13, %14 : vector<8x64xf32>
    %cst_11 = arith.constant 0.000000e+00 : f32
    %16 = vector.broadcast %cst_11 : f32 to vector<8x64xf32>
    %17 = arith.maximumf %15, %16 : vector<8x64xf32>
    %18 = arith.truncf %17 : vector<8x64xf32> to vector<8x64xbf16>
    %c0_12 = arith.constant 0 : index
    %c0_13 = arith.constant 0 : index
    %19 = vector.load %arg4[%c0_12, %c0_13] : memref<64x8xbf16, #tpu.memory_space<vmem>>, vector<64x8xbf16>
    %cst_14 = arith.constant dense<0.000000e+00> : vector<8x8xf32>
    %20 = tpu.matmul %18, %19, %cst_14 {dimension_numbers = #tpu.dot_dimension_numbers<[1], [0], [0], [1], [0, 0, 1, 1], [], []>} : vector<8x64xbf16>, vector<64x8xbf16>, vector<8x8xf32> -> vector<8x8xf32>
    %21 = vector.broadcast %2 : vector<1x8xf32> to vector<8x8xf32>
    %22 = arith.addf %20, %21 : vector<8x8xf32>
    %23 = math.tanh %22 : vector<8x8xf32>
    %c0_15 = arith.constant 0 : index
    %c0_16 = arith.constant 0 : index
    %24 = vector.load %arg6[%c0_15, %c0_16] : memref<8x8xf32, #tpu.memory_space<vmem>>, vector<8x8xf32>
    tpu.vector_store %arg6[%c0_15, %c0_16], %23 {strides = array<i32>} : memref<8x8xf32, #tpu.memory_space<vmem>>, vector<8x8xf32>,
    return
  }
  func.func @transform_0(%arg0: i32) -> (i32, i32) {
    %c0_i32 = arith.constant 0 : i32
    %c0_i32_0 = arith.constant 0 : i32
    return %arg0, %c0_i32 : i32, i32
  }
  func.func @transform_1(%arg0: i32) -> (i32, i32) {
    %c0_i32 = arith.constant 0 : i32
    %c0_i32_0 = arith.constant 0 : i32
    %c0_i32_1 = arith.constant 0 : i32
    return %c0_i32, %c0_i32_0 : i32, i32
  }
  func.func @transform_2(%arg0: i32) -> (i32, i32) {
    %c0_i32 = arith.constant 0 : i32
    %c0_i32_0 = arith.constant 0 : i32
    %c0_i32_1 = arith.constant 0 : i32
    return %c0_i32, %c0_i32_0 : i32, i32
  }
  func.func @transform_3(%arg0: i32) -> (i32, i32) {
    %c0_i32 = arith.constant 0 : i32
    %c0_i32_0 = arith.constant 0 : i32
    %c0_i32_1 = arith.constant 0 : i32
    return %c0_i32, %c0_i32_0 : i32, i32
  }
  func.func @transform_4(%arg0: i32) -> (i32, i32) {
    %c0_i32 = arith.constant 0 : i32
    %c0_i32_0 = arith.constant 0 : i32
    %c0_i32_1 = arith.constant 0 : i32
    return %c0_i32, %c0_i32_0 : i32, i32
  }
  func.func @transform_5(%arg0: i32) -> (i32, i32) {
    %c0_i32 = arith.constant 0 : i32
    %c0_i32_0 = arith.constant 0 : i32
    return %arg0, %c0_i32 : i32, i32
  }
}

</mosaic_0001>

<llo_original>
// kernel: tpu_custom_call.1
$region0: #{tpu_custom_call.1}
  #allocation0 [shape = 'u32[]', space=smem, size = 0x4, offset = 0x4, fixed_abs, tag = 'smem constant byte address 0x4 - core index']
  #allocation1 [shape = 'u32[144,128]{1,0:T(1,128)}', space=vmem, size = 0x12000, scoped, tag = 'internal scratch']
  %s0 = inlined_call_operand.vmem [shape: f32[8,16], index: 0, kind: input, shape index: {}]
  %s1 = inlined_call_operand.vmem [shape: bf16[16,128], index: 1, kind: input, shape index: {}]
  %s2 = inlined_call_operand.vmem [shape: bf16[128,64], index: 2, kind: input, shape index: {}]
  %s3 = inlined_call_operand.vmem [shape: bf16[64,8], index: 3, kind: input, shape index: {}]
  %s4 = inlined_call_operand.vmem [shape: f32[3,128], index: 4, kind: input, shape index: {}]
  %s5 = inlined_call_operand.hbm [shape: f32[8,8], index: 5, kind: output, shape index: {}]
  %s6 = sld [smem:[#allocation0]]
  $region30: #{tpu_custom_call.1} parent=0
    _
  %s8 = ssub.s32 1, %s6
  %s9 = scalar_select 0, %s8, %s6
  $region1: #{tpu_custom_call.1} parent=0
    #allocation2 [shape = 'u8[4096]{0}', space=vmem, size = 0x1000, scoped, tag = 'output window, operand 0, single buffered']
    #allocation3 [shape = 's32[1]{0}', space=sflag, size = 0x4, scoped, tag = 'scoped memory for tpu_custom_call.1']
    %10 = vsyncpa [#allocation3], 0
    // Predicated region
    $region2: #{tpu_custom_call.1} parent=1 // pred_check
      _
    $region3: #{tpu_custom_call.1} parent=1 // pred_check_branch
      %12 = sbr.rel (0) target = $region5
    $region4: #{tpu_custom_call.1} parent=1 // pred_region
      _
    $region5: #{tpu_custom_call.1} parent=1 // pred_fallthru
      _
    // Predicated region
    $region6: #{tpu_custom_call.1} parent=1 // pred_check
      _
    $region7: #{tpu_custom_call.1} parent=1 // pred_check_branch
      %14 = sbr.rel (0) target = $region9
    $region8: #{tpu_custom_call.1} parent=1 // pred_region
      _
    $region9: #{tpu_custom_call.1} parent=1 // pred_fallthru
      _
    // Predicated region
    $region10: #{tpu_custom_call.1} parent=1 // pred_check
      _
    $region11: #{tpu_custom_call.1} parent=1 // pred_check_branch
      %16 = sbr.rel (0) target = $region13
    $region12: #{tpu_custom_call.1} parent=1 // pred_region
      _
    $region13: #{tpu_custom_call.1} parent=1 // pred_fallthru
      _
    // Predicated region
    $region14: #{tpu_custom_call.1} parent=1 // pred_check
      _
    $region15: #{tpu_custom_call.1} parent=1 // pred_check_branch
      %18 = sbr.rel (0) target = $region17
    $region16: #{tpu_custom_call.1} parent=1 // pred_region
      _
    $region17: #{tpu_custom_call.1} parent=1 // pred_fallthru
      _
    // Predicated region
    $region18: #{tpu_custom_call.1} parent=1 // pred_check
      _
    $region19: #{tpu_custom_call.1} parent=1 // pred_check_branch
      %20 = sbr.rel (0) target = $region21
    $region20: #{tpu_custom_call.1} parent=1 // pred_region
      _
    $region21: #{tpu_custom_call.1} parent=1 // pred_fallthru
      _
    %v22 = vld [vmem:[%s4] sm:$0x1]
    %v23 = vld [vmem:[%s4 + $0x1] sm:$0x1]
    %v24 = vld [vmem:[%s4 + $0x2] sm:$0x1]
    %v25 = vld [vmem:[%s0] sm:$0xff]
    %v26 = vpack.c.bf16 %v25, %v25
    %v27 = vld [vmem:[%s1] sm:$0xf]
    %v28 = vld [vmem:[%s1 + $0x4] sm:$0xf]
    %v29 = vlaneseq
    %v30 = vshrl.u32 %v29, 7
    %v31 = vsub.s32 0, %v30
    %v32 = vrot.slane %v22, %v31
    %v35 = vunpack.c.l.b16 %v27
    %v36 = vunpack.c.l.b16 %v28
    %v37 = vpack.c.b16 %v36, %v35
    %vm39 = vcmask 130048
    %v41 = vsel %vm39, %v26, 0
    %43 = vmatprep.subr.bf16.mxu0 0
    %44 = vmatpush1.bf16.msra.mxu0 %v37
    %45 = vmatprep.subr.bf16.mxu0 0
    %46 = vmatpush1.bf16.msra.mxu0 0
    %47 = vmatprep.subr.bf16.mxu0 0
    %48 = vmatpush1.bf16.msra.mxu0 0
    %49 = vmatprep.subr.bf16.mxu0 0
    %50 = vmatpush1.bf16.msra.mxu0 0
    %51 = vmatprep.subr.bf16.mxu0 0
    %52 = vmatpush1.bf16.msra.mxu0 0
    %53 = vmatprep.subr.bf16.mxu0 0
    %54 = vmatpush1.bf16.msra.mxu0 0
    %55 = vmatprep.subr.bf16.mxu0 0
    %56 = vmatpush1.bf16.msra.mxu0 0
    %57 = vmatprep.subr.bf16.mxu0 0
    %58 = vmatpush1.bf16.msra.mxu0 0
    %59 = vmatprep.subr.bf16.mxu0 0
    %60 = vmatpush1.bf16.msra.mxu0 0
    %61 = vmatprep.subr.bf16.mxu0 0
    %62 = vmatpush1.bf16.msra.mxu0 0
    %63 = vmatprep.subr.bf16.mxu0 0
    %64 = vmatpush1.bf16.msra.mxu0 0
    %65 = vmatprep.subr.bf16.mxu0 0
    %66 = vmatpush1.bf16.msra.mxu0 0
    %67 = vmatprep.subr.bf16.mxu0 0
    %68 = vmatpush1.bf16.msra.mxu0 0
    %69 = vmatprep.subr.bf16.mxu0 0
    %70 = vmatpush1.bf16.msra.mxu0 0
    %71 = vmatprep.subr.bf16.mxu0 0
    %72 = vmatpush1.bf16.msra.mxu0 0
    %73 = vmatprep.subr.bf16.mxu0 0
    %74 = vmatpush1.bf16.msra.mxu0 0
    %75 = vmatprep.mubr.bf16.mxu0 0
    %76 = vmatmul.mubr.bf16.gmra.mrb[0].mxu0 %v41
    %v77 = vpop.f32.mrb[0].mxu0
    %v78 = vadd.f32 %v32, %v77
    %v79 = vpop.f32.mrb[0].mxu0
    %v80 = vpop.f32.mrb[0].mxu0
    %v81 = vpop.f32.mrb[0].mxu0
    %82 = vdwg.mxu0
    %v83 = vmax.f32 %v78, 0.0
    %v84 = vpack.c.bf16 %v83, %v83
    %v85 = vld [vmem:[%s2] sm:$0xf]
    %v86 = vld [vmem:[%s2 + $0x4] sm:$0xf]
    %v87 = vld [vmem:[%s2 + $0x8] sm:$0xf]
    %v88 = vld [vmem:[%s2 + $0xc] sm:$0xf]
    %v89 = vld [vmem:[%s2 + $0x10] sm:$0xf]
    %v90 = vld [vmem:[%s2 + $0x14] sm:$0xf]
    %v91 = vld [vmem:[%s2 + $0x18] sm:$0xf]
    %v92 = vld [vmem:[%s2 + $0x1c] sm:$0xf]
    %v93 = vld [vmem:[%s2 + $0x20] sm:$0xf]
    %v94 = vld [vmem:[%s2 + $0x24] sm:$0xf]
    %v95 = vld [vmem:[%s2 + $0x28] sm:$0xf]
    %v96 = vld [vmem:[%s2 + $0x2c] sm:$0xf]
    %v97 = vld [vmem:[%s2 + $0x30] sm:$0xf]
    %v98 = vld [vmem:[%s2 + $0x34] sm:$0xf]
    %v99 = vld [vmem:[%s2 + $0x38] sm:$0xf]
    %v100 = vld [vmem:[%s2 + $0x3c] sm:$0xf]
    %v101 = vlaneseq
    %v102 = vshrl.u32 %v101, 7
    %v103 = vsub.s32 0, %v102
    %v104 = vrot.slane %v23, %v103
    %v121 = vunpack.c.l.b16 %v85
    %v122 = vunpack.c.l.b16 %v86
    %v123 = vunpack.c.l.b16 %v87
    %v124 = vunpack.c.l.b16 %v88
    %v125 = vunpack.c.l.b16 %v89
    %v126 = vunpack.c.l.b16 %v90
    %v127 = vunpack.c.l.b16 %v91
    %v128 = vunpack.c.l.b16 %v92
    %v129 = vunpack.c.l.b16 %v93
    %v130 = vunpack.c.l.b16 %v94
    %v131 = vunpack.c.l.b16 %v95
    %v132 = vunpack.c.l.b16 %v96
    %v133 = vunpack.c.l.b16 %v97
    %v134 = vunpack.c.l.b16 %v98
    %v135 = vunpack.c.l.b16 %v99
    %v136 = vunpack.c.l.b16 %v100
    %v137 = vpack.c.b16 %v122, %v121
    %v138 = vpack.c.b16 %v124, %v123
    %v139 = vpack.c.b16 %v126, %v125
    %v140 = vpack.c.b16 %v128, %v127
    %v141 = vpack.c.b16 %v130, %v129
    %v142 = vpack.c.b16 %v132, %v131
    %v143 = vpack.c.b16 %v134, %v133
    %v144 = vpack.c.b16 %v136, %v135
    %153 = vmatprep.subr.bf16.mxu0 0
    %154 = vmatpush1.bf16.msra.mxu0 %v137
    %155 = vmatprep.subr.bf16.mxu0 0
    %156 = vmatpush1.bf16.msra.mxu0 %v138
    %157 = vmatprep.subr.bf16.mxu0 0
    %158 = vmatpush1.bf16.msra.mxu0 %v139
    %159 = vmatprep.subr.bf16.mxu0 0
    %160 = vmatpush1.bf16.msra.mxu0 %v140
    %161 = vmatprep.subr.bf16.mxu0 0
    %162 = vmatpush1.bf16.msra.mxu0 %v141
    %163 = vmatprep.subr.bf16.mxu0 0
    %164 = vmatpush1.bf16.msra.mxu0 %v142
    %165 = vmatprep.subr.bf16.mxu0 0
    %166 = vmatpush1.bf16.msra.mxu0 %v143
    %167 = vmatprep.subr.bf16.mxu0 0
    %168 = vmatpush1.bf16.msra.mxu0 %v144
    %169 = vmatprep.subr.bf16.mxu0 0
    %170 = vmatpush1.bf16.msra.mxu0 0
    %171 = vmatprep.subr.bf16.mxu0 0
    %172 = vmatpush1.bf16.msra.mxu0 0
    %173 = vmatprep.subr.bf16.mxu0 0
    %174 = vmatpush1.bf16.msra.mxu0 0
    %175 = vmatprep.subr.bf16.mxu0 0
    %176 = vmatpush1.bf16.msra.mxu0 0
    %177 = vmatprep.subr.bf16.mxu0 0
    %178 = vmatpush1.bf16.msra.mxu0 0
    %179 = vmatprep.subr.bf16.mxu0 0
    %180 = vmatpush1.bf16.msra.mxu0 0
    %181 = vmatprep.subr.bf16.mxu0 0
    %182 = vmatpush1.bf16.msra.mxu0 0
    %183 = vmatprep.subr.bf16.mxu0 0
    %184 = vmatpush1.bf16.msra.mxu0 0
    %185 = vmatprep.mubr.bf16.mxu0 0
    %186 = vmatmul.mubr.bf16.gmra.mrb[0].mxu0 %v84
    %v187 = vpop.f32.mrb[0].mxu0
    %v188 = vadd.f32 %v104, %v187
    %v189 = vpop.f32.mrb[0].mxu0
    %v190 = vpop.f32.mrb[0].mxu0
    %v191 = vpop.f32.mrb[0].mxu0
    %192 = vdwg.mxu0
    %v193 = vmax.f32 %v188, 0.0
    %v194 = vpack.c.bf16 %v193, %v193
    %v195 = vld [vmem:[%s3] sm:$0xf]
    %v196 = vld [vmem:[%s3 + $0x4] sm:$0xf]
    %v197 = vld [vmem:[%s3 + $0x8] sm:$0xf]
    %v198 = vld [vmem:[%s3 + $0xc] sm:$0xf]
    %v199 = vld [vmem:[%s3 + $0x10] sm:$0xf]
    %v200 = vld [vmem:[%s3 + $0x14] sm:$0xf]
    %v201 = vld [vmem:[%s3 + $0x18] sm:$0xf]
    %v202 = vld [vmem:[%s3 + $0x1c] sm:$0xf]
    %v203 = vlaneseq
    %v204 = vshrl.u32 %v203, 7
    %v205 = vsub.s32 0, %v204
    %v206 = vrot.slane %v24, %v205
    %v215 = vunpack.c.l.b16 %v195
    %v216 = vunpack.c.l.b16 %v196
    %v217 = vunpack.c.l.b16 %v197
    %v218 = vunpack.c.l.b16 %v198
    %v219 = vunpack.c.l.b16 %v199
    %v220 = vunpack.c.l.b16 %v200
    %v221 = vunpack.c.l.b16 %v201
    %v222 = vunpack.c.l.b16 %v202
    %v223 = vpack.c.b16 %v216, %v215
    %v224 = vpack.c.b16 %v218, %v217
    %v225 = vpack.c.b16 %v220, %v219
    %v226 = vpack.c.b16 %v222, %v221
    %vm231 = vcmask 523264
    %v233 = vsel %vm231, %v194, 0
    %235 = vmatprep.subr.bf16.mxu0 0
    %236 = vmatpush1.bf16.msra.mxu0 %v223
    %237 = vmatprep.subr.bf16.mxu0 0
    %238 = vmatpush1.bf16.msra.mxu0 %v224
    %239 = vmatprep.subr.bf16.mxu0 0
    %240 = vmatpush1.bf16.msra.mxu0 %v225
    %241 = vmatprep.subr.bf16.mxu0 0
    %242 = vmatpush1.bf16.msra.mxu0 %v226
    %243 = vmatprep.subr.bf16.mxu0 0
    %244 = vmatpush1.bf16.msra.mxu0 0
    %245 = vmatprep.subr.bf16.mxu0 0
    %246 = vmatpush1.bf16.msra.mxu0 0
    %247 = vmatprep.subr.bf16.mxu0 0
    %248 = vmatpush1.bf16.msra.mxu0 0
    %249 = vmatprep.subr.bf16.mxu0 0
    %250 = vmatpush1.bf16.msra.mxu0 0
    %251 = vmatprep.subr.bf16.mxu0 0
    %252 = vmatpush1.bf16.msra.mxu0 0
    %253 = vmatprep.subr.bf16.mxu0 0
    %254 = vmatpush1.bf16.msra.mxu0 0
    %255 = vmatprep.subr.bf16.mxu0 0
    %256 = vmatpush1.bf16.msra.mxu0 0
    %257 = vmatprep.subr.bf16.mxu0 0
    %258 = vmatpush1.bf16.msra.mxu0 0
    %259 = vmatprep.subr.bf16.mxu0 0
    %260 = vmatpush1.bf16.msra.mxu0 0
    %261 = vmatprep.subr.bf16.mxu0 0
    %262 = vmatpush1.bf16.msra.mxu0 0
    %263 = vmatprep.subr.bf16.mxu0 0
    %264 = vmatpush1.bf16.msra.mxu0 0
    %265 = vmatprep.subr.bf16.mxu0 0
    %266 = vmatpush1.bf16.msra.mxu0 0
    %267 = vmatprep.mubr.bf16.mxu0 0
    %268 = vmatmul.mubr.bf16.gmra.mrb[0].mxu0 %v233
    %v269 = vpop.f32.mrb[0].mxu0
    %v270 = vadd.f32 %v206, %v269
    %v271 = vpop.f32.mrb[0].mxu0
    %v272 = vpop.f32.mrb[0].mxu0
    %v273 = vpop.f32.mrb[0].mxu0
    %274 = vdwg.mxu0
    %v275 = vtanh.pop %v270
    %vm276 = vcmask 64512
    %277 = vst.msk [vmem:[#allocation2] sm:$0xff] %vm276, %v275
    // Predicated region
    $region22: #{tpu_custom_call.1} parent=1 // pred_check
      _
    $region23: #{tpu_custom_call.1} parent=1 // pred_check_branch
      %279 = sbr.rel (0) target = $region25
    $region24: #{tpu_custom_call.1} parent=1 // pred_region
      %s281 = ssub.s32 128, 128
      %282 = vsyncadd [#allocation3], %s281
      %s284 = sshll.u32 [#allocation2], 4
      %s285 = int_to_ptr.vmem [resolvable:$true] %s284
      %287 = dma.vmem_to_hbm [thread:$0]  %s285, 128, %s5, [#allocation3]
    $region25: #{tpu_custom_call.1} parent=1 // pred_fallthru
      _
    // Predicated region
    $region26: #{tpu_custom_call.1} parent=1 // pred_check
      _
    $region27: #{tpu_custom_call.1} parent=1 // pred_check_branch
      %289 = sbr.rel (0) target = $region29
    $region28: #{tpu_custom_call.1} parent=1 // pred_region
      %290 = dma.done [#allocation3], 128
    $region29: #{tpu_custom_call.1} parent=1 // pred_fallthru
      _
    %291 = vsyncpa [#allocation3], 1

</llo_original>
